<compile_context>
chip_gen: v6e
topology: v6e:2x2x1
jax: 0.10.0
libtpu: 0.0.40
codegen_flags: <defaults>
</compile_context>

<pallas_src>
import functools
from itertools import permutations

import numpy as np
import jax
import jax.numpy as jnp
from jax.experimental import pallas as pl
from jax.experimental.pallas import tpu as pltpu

_LANE = 128
_SUB = 8


def _round_up(x, m):
    return ((x + m - 1) // m) * m


def _mspe_kernel(*refs, perms, with_distance):
    """Inputs: (num_sources*8, tile_cols) sublane+lane-dense tiles (batch fills
    both sublanes and lanes).  Outputs: (8, 1) per-tile partial sums; padded
    samples contribute exactly 0 to every partial.
    """
    if with_distance:
        pred_ref, tgt_ref, dpred_ref, dtgt_ref, mspe_ref, dist_ref = refs
    else:
        pred_ref, tgt_ref, mspe_ref = refs

    m = pred_ref.shape[0] // _SUB
    pi = jnp.float32(np.pi)
    inv_pi = jnp.float32(1.0 / np.pi)
    half = jnp.float32(0.5)

    # Pairwise squared periodic errors sq[i][j] = wrap(pred_i - tgt_j)^2,
    # each an (8, tile_cols) slab.
    sq = []
    for i in range(m):
        p_i = pred_ref[_SUB * i:_SUB * (i + 1), :]
        row = []
        for j in range(m):
            d = p_i - tgt_ref[_SUB * j:_SUB * (j + 1), :]
            # Nearest-multiple wrap (round-half-up via floor).  Only e*e is used,
            # so this matches ((d + pi/2) % pi - pi/2)^2 up to a benign sign flip
            # exactly at the +/-pi/2 boundary, and d == 0 gives e == 0 exactly.
            e = d - pi * jnp.floor(d * inv_pi + half)
            row.append(e * e)
        sq.append(row)

    # Min over permutations; per-permutation sums share common prefixes.
    cache = {}

    def prefix_sum(prefix):
        if prefix in cache:
            return cache[prefix]
        t = len(prefix) - 1
        if t == 0:
            val = sq[prefix[0]][0]
        else:
            val = prefix_sum(prefix[:-1]) + sq[prefix[-1]][t]
        cache[prefix] = val
        return val

    best = None
    for p in perms:
        s = prefix_sum(p)
        best = s if best is None else jnp.minimum(best, s)

    # Reduce the whole tile to an (8, 1) partial; scalar scalings happen in JAX.
    mspe_ref[...] = jnp.sum(best, axis=1, keepdims=True)

    if with_distance:
        dm = dpred_ref.shape[0] // _SUB
        acc = None
        for i in range(dm):
            d = dpred_ref[_SUB * i:_SUB * (i + 1), :] - dtgt_ref[_SUB * i:_SUB * (i + 1), :]
            v = d * d
            acc = v if acc is None else acc + v
        dist_ref[...] = jnp.sum(acc, axis=1, keepdims=True)


def mspe_loss(doa_predictions, doa, distance_predictions=None, distance=None,
              *, lane_tile=65536):
    """MSPE loss (sum over batch of min-over-permutations mean squared periodic
    error) + optional distance MSE, matching MSPELoss.forward."""
    dp = jnp.asarray(doa_predictions, jnp.float32)
    dt = jnp.asarray(doa, jnp.float32)
    batch, num_sources = dp.shape
    num_targets = dt.shape[1]
    if num_sources > 5:
        # TODO(synk): num_sources! permutations are statically unrolled; >5 sources
        # (>=720 permutations) would explode compile time / code size / VMEM temps.
        raise ValueError("mspe_loss Pallas kernel supports at most 5 sources.")
    perms = tuple(permutations(range(num_sources)))

    with_distance = distance_predictions is not None
    if with_distance and distance is None:
        raise Exception('Target distances values are missing!')

    # ---- Batch tiling: sublane+lane dense; big tiles, several steps when large ----
    sample_quant = _SUB * _LANE                               # 1024 samples / (8,128) vreg
    max_tile = _round_up(max(lane_tile, sample_quant), sample_quant)
    tile_b = _round_up(max(1, -(-batch // 8)), sample_quant)  # ~batch/8 -> ~8 steps
    tile_b = max(tile_b, min(8 * sample_quant, _round_up(batch, sample_quant)))
    tile_b = min(tile_b, max_tile)
    batch_pad = _round_up(batch, tile_b)
    num_tiles = batch_pad // tile_b
    cols = batch_pad // _SUB
    tile_cols = tile_b // _SUB

    def to_dense(x):
        # (B, M) -> (M, B_pad) -> (M*8, B_pad/8): batch fills sublanes AND lanes.
        x = jnp.asarray(x, jnp.float32)
        xt = jnp.pad(x.T, ((0, 0), (0, batch_pad - x.shape[0])))
        return xt.reshape(x.shape[1] * _SUB, cols)

    inputs = [to_dense(dp), to_dense(dt)]
    if with_distance:
        ddp = jnp.asarray(distance_predictions, jnp.float32)
        ddt = jnp.asarray(distance, jnp.float32)
        inputs += [to_dense(ddp), to_dense(ddt)]

    in_specs = [pl.BlockSpec((x.shape[0], tile_cols), lambda i: (0, i)) for x in inputs]
    part_spec = pl.BlockSpec((_SUB, 1), lambda i: (i, 0))
    part_shape = jax.ShapeDtypeStruct((num_tiles * _SUB, 1), jnp.float32)

    outs = pl.pallas_call(
        functools.partial(_mspe_kernel, perms=perms, with_distance=with_distance),
        grid=(num_tiles,),
        in_specs=in_specs,
        out_specs=(part_spec, part_spec) if with_distance else part_spec,
        out_shape=(part_shape, part_shape) if with_distance else part_shape,
        compiler_params=pltpu.CompilerParams(
            dimension_semantics=("parallel",),
            vmem_limit_bytes=32 * 1024 * 1024,
            allow_input_fusion=[True] * len(inputs)),
    )(*inputs)

    if with_distance:
        mspe_part, dist_part = outs
        return (jnp.sum(mspe_part) / jnp.float32(num_targets)
                + jnp.sum(dist_part) / jnp.float32(ddp.size))
    return jnp.sum(outs) / jnp.float32(num_targets)


def _reference_loss(dp, dt, distp=None, distt=None):
    """Pure-NumPy reference mirroring the PyTorch forward."""
    dp = np.asarray(dp, np.float32)
    dt = np.asarray(dt, np.float32)
    m = dt.shape[1]
    perm_idx = np.asarray(list(permutations(range(dp.shape[1]))))
    pp = dp[:, perm_idx]                                   # (B, P, M)
    err = (pp - dt[:, None, :] + np.pi / 2) % np.pi - np.pi / 2
    mspe = (err ** 2).sum(-1) / m
    result = mspe.min(-1).sum()
    if distp is not None:
        distp = np.asarray(distp, np.float32)
        distt = np.asarray(distt, np.float32)
        result = result + np.mean((distp - distt) ** 2)
    return np.float32(result)


if __name__ == "__main__":
    key = jax.random.PRNGKey(0)
    B, M = 2, 3  # batch_size, num_sources -> 3! = 6 permutations
    k1, k2, k3, k4, k5, k6 = jax.random.split(key, 6)
    doa_pred = jax.random.uniform(k1, (B, M), jnp.float32,
                                  minval=-np.pi / 2, maxval=np.pi / 2)
    doa_tgt = jax.random.uniform(k2, (B, M), jnp.float32,
                                 minval=-np.pi / 2, maxval=np.pi / 2)
    dist_pred = jax.random.uniform(k3, (B, M), jnp.float32, minval=0.0, maxval=10.0)
    dist_tgt = jax.random.uniform(k4, (B, M), jnp.float32, minval=0.0, maxval=10.0)

    # DOA-only path (default distance=None).
    loss = jax.block_until_ready(mspe_loss(doa_pred, doa_tgt))
    np.testing.assert_allclose(np.asarray(loss),
                               _reference_loss(doa_pred, doa_tgt),
                               rtol=1e-5, atol=1e-5)

    # DOA + distance path (fused into the same kernel launch).
    loss_d = jax.block_until_ready(mspe_loss(doa_pred, doa_tgt, dist_pred, dist_tgt))
    np.testing.assert_allclose(np.asarray(loss_d),
                               _reference_loss(doa_pred, doa_tgt, dist_pred, dist_tgt),
                               rtol=1e-5, atol=1e-5)

    # Multi-tile path: batch spans several 1024-sample tiles plus zero padding.
    B2 = 2500
    doa_pred2 = jax.random.uniform(k5, (B2, M), jnp.float32,
                                   minval=-np.pi / 2, maxval=np.pi / 2)
    doa_tgt2 = jax.random.uniform(k6, (B2, M), jnp.float32,
                                  minval=-np.pi / 2, maxval=np.pi / 2)
    loss2 = jax.block_until_ready(mspe_loss(doa_pred2, doa_tgt2, lane_tile=1024))
    np.testing.assert_allclose(np.asarray(loss2),
                               _reference_loss(doa_pred2, doa_tgt2),
                               rtol=1e-4, atol=1e-3)

    print("KERNEL_OK")
</pallas_src>

<mosaic_0001>
module attributes {stable_mosaic.version = 11 : i64} {
  func.func @_mspe_kernel(%arg0: i32, %arg1: memref<24x128xf32, #tpu.memory_space<vmem>>, %arg2: memref<24x128xf32, #tpu.memory_space<vmem>>, %arg3: memref<8x1xf32, #tpu.memory_space<vmem>>) attributes {dimension_semantics = [#tpu.dimension_semantics<parallel>], iteration_bounds = array<i64: 1>, scalar_prefetch = 0 : i64, scratch_operands = 0 : i64, tpu.core_type = #tpu.core_type<tc>, window_params = [{transform_indices = @transform_0, window_bounds = array<i64: 24, 128>}, {transform_indices = @transform_1, window_bounds = array<i64: 24, 128>}, {transform_indices = @transform_2, window_bounds = array<i64: 8, 1>}]} {
    %c0 = arith.constant 0 : index
    %c0_0 = arith.constant 0 : index
    %0 = vector.load %arg1[%c0, %c0_0] : memref<24x128xf32, #tpu.memory_space<vmem>>, vector<8x128xf32>
    %c0_1 = arith.constant 0 : index
    %c0_2 = arith.constant 0 : index
    %1 = vector.load %arg2[%c0_1, %c0_2] : memref<24x128xf32, #tpu.memory_space<vmem>>, vector<8x128xf32>
    %2 = arith.subf %0, %1 : vector<8x128xf32>
    %cst = arith.constant 0.318309873 : f32
    %3 = vector.broadcast %cst : f32 to vector<8x128xf32>
    %4 = arith.mulf %2, %3 : vector<8x128xf32>
    %cst_3 = arith.constant 5.000000e-01 : f32
    %5 = vector.broadcast %cst_3 : f32 to vector<8x128xf32>
    %6 = arith.addf %4, %5 : vector<8x128xf32>
    %7 = math.floor %6 : vector<8x128xf32>
    %cst_4 = arith.constant 3.14159274 : f32
    %8 = vector.broadcast %cst_4 : f32 to vector<8x128xf32>
    %9 = arith.mulf %8, %7 : vector<8x128xf32>
    %10 = arith.subf %2, %9 : vector<8x128xf32>
    %11 = arith.mulf %10, %10 : vector<8x128xf32>
    %c8 = arith.constant 8 : index
    %c0_5 = arith.constant 0 : index
    %12 = vector.load %arg2[%c8, %c0_5] : memref<24x128xf32, #tpu.memory_space<vmem>>, vector<8x128xf32>
    %13 = arith.subf %0, %12 : vector<8x128xf32>
    %cst_6 = arith.constant 0.318309873 : f32
    %14 = vector.broadcast %cst_6 : f32 to vector<8x128xf32>
    %15 = arith.mulf %13, %14 : vector<8x128xf32>
    %cst_7 = arith.constant 5.000000e-01 : f32
    %16 = vector.broadcast %cst_7 : f32 to vector<8x128xf32>
    %17 = arith.addf %15, %16 : vector<8x128xf32>
    %18 = math.floor %17 : vector<8x128xf32>
    %cst_8 = arith.constant 3.14159274 : f32
    %19 = vector.broadcast %cst_8 : f32 to vector<8x128xf32>
    %20 = arith.mulf %19, %18 : vector<8x128xf32>
    %21 = arith.subf %13, %20 : vector<8x128xf32>
    %22 = arith.mulf %21, %21 : vector<8x128xf32>
    %c16 = arith.constant 16 : index
    %c0_9 = arith.constant 0 : index
    %23 = vector.load %arg2[%c16, %c0_9] : memref<24x128xf32, #tpu.memory_space<vmem>>, vector<8x128xf32>
    %24 = arith.subf %0, %23 : vector<8x128xf32>
    %cst_10 = arith.constant 0.318309873 : f32
    %25 = vector.broadcast %cst_10 : f32 to vector<8x128xf32>
    %26 = arith.mulf %24, %25 : vector<8x128xf32>
    %cst_11 = arith.constant 5.000000e-01 : f32
    %27 = vector.broadcast %cst_11 : f32 to vector<8x128xf32>
    %28 = arith.addf %26, %27 : vector<8x128xf32>
    %29 = math.floor %28 : vector<8x128xf32>
    %cst_12 = arith.constant 3.14159274 : f32
    %30 = vector.broadcast %cst_12 : f32 to vector<8x128xf32>
    %31 = arith.mulf %30, %29 : vector<8x128xf32>
    %32 = arith.subf %24, %31 : vector<8x128xf32>
    %33 = arith.mulf %32, %32 : vector<8x128xf32>
    %c8_13 = arith.constant 8 : index
    %c0_14 = arith.constant 0 : index
    %34 = vector.load %arg1[%c8_13, %c0_14] : memref<24x128xf32, #tpu.memory_space<vmem>>, vector<8x128xf32>
    %c0_15 = arith.constant 0 : index
    %c0_16 = arith.constant 0 : index
    %35 = vector.load %arg2[%c0_15, %c0_16] : memref<24x128xf32, #tpu.memory_space<vmem>>, vector<8x128xf32>
    %36 = arith.subf %34, %35 : vector<8x128xf32>
    %cst_17 = arith.constant 0.318309873 : f32
    %37 = vector.broadcast %cst_17 : f32 to vector<8x128xf32>
    %38 = arith.mulf %36, %37 : vector<8x128xf32>
    %cst_18 = arith.constant 5.000000e-01 : f32
    %39 = vector.broadcast %cst_18 : f32 to vector<8x128xf32>
    %40 = arith.addf %38, %39 : vector<8x128xf32>
    %41 = math.floor %40 : vector<8x128xf32>
    %cst_19 = arith.constant 3.14159274 : f32
    %42 = vector.broadcast %cst_19 : f32 to vector<8x128xf32>
    %43 = arith.mulf %42, %41 : vector<8x128xf32>
    %44 = arith.subf %36, %43 : vector<8x128xf32>
    %45 = arith.mulf %44, %44 : vector<8x128xf32>
    %c8_20 = arith.constant 8 : index
    %c0_21 = arith.constant 0 : index
    %46 = vector.load %arg2[%c8_20, %c0_21] : memref<24x128xf32, #tpu.memory_space<vmem>>, vector<8x128xf32>
    %47 = arith.subf %34, %46 : vector<8x128xf32>
    %cst_22 = arith.constant 0.318309873 : f32
    %48 = vector.broadcast %cst_22 : f32 to vector<8x128xf32>
    %49 = arith.mulf %47, %48 : vector<8x128xf32>
    %cst_23 = arith.constant 5.000000e-01 : f32
    %50 = vector.broadcast %cst_23 : f32 to vector<8x128xf32>
    %51 = arith.addf %49, %50 : vector<8x128xf32>
    %52 = math.floor %51 : vector<8x128xf32>
    %cst_24 = arith.constant 3.14159274 : f32
    %53 = vector.broadcast %cst_24 : f32 to vector<8x128xf32>
    %54 = arith.mulf %53, %52 : vector<8x128xf32>
    %55 = arith.subf %47, %54 : vector<8x128xf32>
    %56 = arith.mulf %55, %55 : vector<8x128xf32>
    %c16_25 = arith.constant 16 : index
    %c0_26 = arith.constant 0 : index
    %57 = vector.load %arg2[%c16_25, %c0_26] : memref<24x128xf32, #tpu.memory_space<vmem>>, vector<8x128xf32>
    %58 = arith.subf %34, %57 : vector<8x128xf32>
    %cst_27 = arith.constant 0.318309873 : f32
    %59 = vector.broadcast %cst_27 : f32 to vector<8x128xf32>
    %60 = arith.mulf %58, %59 : vector<8x128xf32>
    %cst_28 = arith.constant 5.000000e-01 : f32
    %61 = vector.broadcast %cst_28 : f32 to vector<8x128xf32>
    %62 = arith.addf %60, %61 : vector<8x128xf32>
    %63 = math.floor %62 : vector<8x128xf32>
    %cst_29 = arith.constant 3.14159274 : f32
    %64 = vector.broadcast %cst_29 : f32 to vector<8x128xf32>
    %65 = arith.mulf %64, %63 : vector<8x128xf32>
    %66 = arith.subf %58, %65 : vector<8x128xf32>
    %67 = arith.mulf %66, %66 : vector<8x128xf32>
    %c16_30 = arith.constant 16 : index
    %c0_31 = arith.constant 0 : index
    %68 = vector.load %arg1[%c16_30, %c0_31] : memref<24x128xf32, #tpu.memory_space<vmem>>, vector<8x128xf32>
    %c0_32 = arith.constant 0 : index
    %c0_33 = arith.constant 0 : index
    %69 = vector.load %arg2[%c0_32, %c0_33] : memref<24x128xf32, #tpu.memory_space<vmem>>, vector<8x128xf32>
    %70 = arith.subf %68, %69 : vector<8x128xf32>
    %cst_34 = arith.constant 0.318309873 : f32
    %71 = vector.broadcast %cst_34 : f32 to vector<8x128xf32>
    %72 = arith.mulf %70, %71 : vector<8x128xf32>
    %cst_35 = arith.constant 5.000000e-01 : f32
    %73 = vector.broadcast %cst_35 : f32 to vector<8x128xf32>
    %74 = arith.addf %72, %73 : vector<8x128xf32>
    %75 = math.floor %74 : vector<8x128xf32>
    %cst_36 = arith.constant 3.14159274 : f32
    %76 = vector.broadcast %cst_36 : f32 to vector<8x128xf32>
    %77 = arith.mulf %76, %75 : vector<8x128xf32>
    %78 = arith.subf %70, %77 : vector<8x128xf32>
    %79 = arith.mulf %78, %78 : vector<8x128xf32>
    %c8_37 = arith.constant 8 : index
    %c0_38 = arith.constant 0 : index
    %80 = vector.load %arg2[%c8_37, %c0_38] : memref<24x128xf32, #tpu.memory_space<vmem>>, vector<8x128xf32>
    %81 = arith.subf %68, %80 : vector<8x128xf32>
    %cst_39 = arith.constant 0.318309873 : f32
    %82 = vector.broadcast %cst_39 : f32 to vector<8x128xf32>
    %83 = arith.mulf %81, %82 : vector<8x128xf32>
    %cst_40 = arith.constant 5.000000e-01 : f32
    %84 = vector.broadcast %cst_40 : f32 to vector<8x128xf32>
    %85 = arith.addf %83, %84 : vector<8x128xf32>
    %86 = math.floor %85 : vector<8x128xf32>
    %cst_41 = arith.constant 3.14159274 : f32
    %87 = vector.broadcast %cst_41 : f32 to vector<8x128xf32>
    %88 = arith.mulf %87, %86 : vector<8x128xf32>
    %89 = arith.subf %81, %88 : vector<8x128xf32>
    %90 = arith.mulf %89, %89 : vector<8x128xf32>
    %c16_42 = arith.constant 16 : index
    %c0_43 = arith.constant 0 : index
    %91 = vector.load %arg2[%c16_42, %c0_43] : memref<24x128xf32, #tpu.memory_space<vmem>>, vector<8x128xf32>
    %92 = arith.subf %68, %91 : vector<8x128xf32>
    %cst_44 = arith.constant 0.318309873 : f32
    %93 = vector.broadcast %cst_44 : f32 to vector<8x128xf32>
    %94 = arith.mulf %92, %93 : vector<8x128xf32>
    %cst_45 = arith.constant 5.000000e-01 : f32
    %95 = vector.broadcast %cst_45 : f32 to vector<8x128xf32>
    %96 = arith.addf %94, %95 : vector<8x128xf32>
    %97 = math.floor %96 : vector<8x128xf32>
    %cst_46 = arith.constant 3.14159274 : f32
    %98 = vector.broadcast %cst_46 : f32 to vector<8x128xf32>
    %99 = arith.mulf %98, %97 : vector<8x128xf32>
    %100 = arith.subf %92, %99 : vector<8x128xf32>
    %101 = arith.mulf %100, %100 : vector<8x128xf32>
    %102 = arith.addf %11, %56 : vector<8x128xf32>
    %103 = arith.addf %102, %101 : vector<8x128xf32>
    %104 = arith.addf %11, %90 : vector<8x128xf32>
    %105 = arith.addf %104, %67 : vector<8x128xf32>
    %106 = arith.minimumf %103, %105 : vector<8x128xf32>
    %107 = arith.addf %45, %22 : vector<8x128xf32>
    %108 = arith.addf %107, %101 : vector<8x128xf32>
    %109 = arith.minimumf %106, %108 : vector<8x128xf32>
    %110 = arith.addf %45, %90 : vector<8x128xf32>
    %111 = arith.addf %110, %33 : vector<8x128xf32>
    %112 = arith.minimumf %109, %111 : vector<8x128xf32>
    %113 = arith.addf %79, %22 : vector<8x128xf32>
    %114 = arith.addf %113, %67 : vector<8x128xf32>
    %115 = arith.minimumf %112, %114 : vector<8x128xf32>
    %116 = arith.addf %79, %56 : vector<8x128xf32>
    %117 = arith.addf %116, %33 : vector<8x128xf32>
    %118 = arith.minimumf %115, %117 : vector<8x128xf32>
    %cst_47 = arith.constant dense<0.000000e+00> : vector<8xf32>
    %119 = vector.multi_reduction <add>, %118, %cst_47 [1] : vector<8x128xf32> to vector<8xf32>
    %120 = vector.shape_cast %119 : vector<8xf32> to vector<8x1xf32>
    %c0_48 = arith.constant 0 : index
    %c0_49 = arith.constant 0 : index
    %121 = vector.load %arg3[%c0_48, %c0_49] : memref<8x1xf32, #tpu.memory_space<vmem>>, vector<8x1xf32>
    tpu.vector_store %arg3[%c0_48, %c0_49], %120 {strides = array<i32>} : memref<8x1xf32, #tpu.memory_space<vmem>>, vector<8x1xf32>,
    return
  }
  func.func @transform_0(%arg0: i32) -> (i32, i32) {
    %c0_i32 = arith.constant 0 : i32
    %c0_i32_0 = arith.constant 0 : i32
    return %c0_i32, %arg0 : i32, i32
  }
  func.func @transform_1(%arg0: i32) -> (i32, i32) {
    %c0_i32 = arith.constant 0 : i32
    %c0_i32_0 = arith.constant 0 : i32
    return %c0_i32, %arg0 : i32, i32
  }
  func.func @transform_2(%arg0: i32) -> (i32, i32) {
    %c0_i32 = arith.constant 0 : i32
    %c0_i32_0 = arith.constant 0 : i32
    return %arg0, %c0_i32 : i32, i32
  }
}

</mosaic_0001>

<llo_original>
// kernel: tpu_custom_call.1
$region0: #{tpu_custom_call.1}
  #allocation0 [shape = 'u32[]', space=smem, size = 0x4, offset = 0x4, fixed_abs, tag = 'smem constant byte address 0x4 - core index']
  #allocation1 [shape = 'u32[144,128]{1,0:T(1,128)}', space=vmem, size = 0x12000, scoped, tag = 'internal scratch']
  %s0 = inlined_call_operand.hbm [shape: f32[24,128], index: 0, kind: input, shape index: {}]
  %s1 = inlined_call_operand.hbm [shape: f32[24,128], index: 1, kind: input, shape index: {}]
  %s2 = inlined_call_operand.vmem [shape: f32[8,1], index: 2, kind: output, shape index: {}]
  %s3 = sld [smem:[#allocation0]]
  $region26: #{tpu_custom_call.1} parent=0
    _
  %s5 = ssub.s32 1, %s3
  %s6 = scalar_select 0, %s5, %s3
  $region1: #{tpu_custom_call.1} parent=0
    #allocation2 [shape = 'u8[12288]{0}', space=vmem, size = 0x3000, scoped, tag = 'input window, operand 0, single buffered']
    #allocation3 [shape = 's32[1]{0}', space=sflag, size = 0x4, scoped, tag = 'scoped memory for tpu_custom_call.1']
    #allocation4 [shape = 'u8[12288]{0}', space=vmem, size = 0x3000, scoped, tag = 'input window, operand 1, single buffered']
    #allocation5 [shape = 's32[1]{0}', space=sflag, size = 0x4, scoped, tag = 'scoped memory for tpu_custom_call.1']
    %7 = vsyncpa [#allocation3], 0
    %8 = vsyncpa [#allocation5], 0
    // Predicated region
    $region2: #{tpu_custom_call.1} parent=1 // pred_check
      _
    $region3: #{tpu_custom_call.1} parent=1 // pred_check_branch
      %10 = sbr.rel (0) target = $region5
    $region4: #{tpu_custom_call.1} parent=1 // pred_region
      %s12 = ssub.s32 384, 384
      %13 = vsyncadd [#allocation3], %s12
      %s14 = sshll.u32 [#allocation2], 4
      %s15 = int_to_ptr.vmem [resolvable:$true] %s14
      %20 = dma.hbm_to_vmem [thread:$0]  %s0, 384, %s15, [#allocation3], 128, 128, 8
    $region5: #{tpu_custom_call.1} parent=1 // pred_fallthru
      _
    // Predicated region
    $region6: #{tpu_custom_call.1} parent=1 // pred_check
      _
    $region7: #{tpu_custom_call.1} parent=1 // pred_check_branch
      %22 = sbr.rel (0) target = $region9
    $region8: #{tpu_custom_call.1} parent=1 // pred_region
      %s24 = ssub.s32 384, 384
      %25 = vsyncadd [#allocation5], %s24
      %s26 = sshll.u32 [#allocation4], 4
      %s27 = int_to_ptr.vmem [resolvable:$true] %s26
      %32 = dma.hbm_to_vmem [thread:$0]  %s1, 384, %s27, [#allocation5], 128, 128, 8
    $region9: #{tpu_custom_call.1} parent=1 // pred_fallthru
      _
    // Predicated region
    $region10: #{tpu_custom_call.1} parent=1 // pred_check
      _
    $region11: #{tpu_custom_call.1} parent=1 // pred_check_branch
      %34 = sbr.rel (0) target = $region13
    $region12: #{tpu_custom_call.1} parent=1 // pred_region
      %35 = dma.done [#allocation3], 384
    $region13: #{tpu_custom_call.1} parent=1 // pred_fallthru
      _
    // Predicated region
    $region14: #{tpu_custom_call.1} parent=1 // pred_check
      _
    $region15: #{tpu_custom_call.1} parent=1 // pred_check_branch
      %37 = sbr.rel (0) target = $region17
    $region16: #{tpu_custom_call.1} parent=1 // pred_region
      %38 = dma.done [#allocation5], 384
    $region17: #{tpu_custom_call.1} parent=1 // pred_fallthru
      _
    %v39 = vld [vmem:[#allocation2] sm:$0xff]
    %v40 = vld [vmem:[#allocation4] sm:$0xff]
    %v41 = vsub.f32 %v39, %v40
    %v42 = vmul.f32 %v41, 0.31830987
    %v43 = vadd.f32 %v42, 0.5
    %v44 = vfloor.f32 %v43
    %v45 = vmul.f32 %v44, 3.1415927
    %v46 = vsub.f32 %v41, %v45
    %v47 = vmul.f32 %v46, %v46
    %v48 = vld [vmem:[#allocation4 + $0x8] sm:$0xff]
    %v49 = vsub.f32 %v39, %v48
    %v50 = vmul.f32 %v49, 0.31830987
    %v51 = vadd.f32 %v50, 0.5
    %v52 = vfloor.f32 %v51
    %v53 = vmul.f32 %v52, 3.1415927
    %v54 = vsub.f32 %v49, %v53
    %v55 = vmul.f32 %v54, %v54
    %v56 = vld [vmem:[#allocation4 + $0x10] sm:$0xff]
    %v57 = vsub.f32 %v39, %v56
    %v58 = vmul.f32 %v57, 0.31830987
    %v59 = vadd.f32 %v58, 0.5
    %v60 = vfloor.f32 %v59
    %v61 = vmul.f32 %v60, 3.1415927
    %v62 = vsub.f32 %v57, %v61
    %v63 = vmul.f32 %v62, %v62
    %v64 = vld [vmem:[#allocation2 + $0x8] sm:$0xff]
    %v65 = vsub.f32 %v64, %v40
    %v66 = vmul.f32 %v65, 0.31830987
    %v67 = vadd.f32 %v66, 0.5
    %v68 = vfloor.f32 %v67
    %v69 = vmul.f32 %v68, 3.1415927
    %v70 = vsub.f32 %v65, %v69
    %v71 = vmul.f32 %v70, %v70
    %v72 = vsub.f32 %v64, %v48
    %v73 = vmul.f32 %v72, 0.31830987
    %v74 = vadd.f32 %v73, 0.5
    %v75 = vfloor.f32 %v74
    %v76 = vmul.f32 %v75, 3.1415927
    %v77 = vsub.f32 %v72, %v76
    %v78 = vmul.f32 %v77, %v77
    %v79 = vsub.f32 %v64, %v56
    %v80 = vmul.f32 %v79, 0.31830987
    %v81 = vadd.f32 %v80, 0.5
    %v82 = vfloor.f32 %v81
    %v83 = vmul.f32 %v82, 3.1415927
    %v84 = vsub.f32 %v79, %v83
    %v85 = vmul.f32 %v84, %v84
    %v86 = vld [vmem:[#allocation2 + $0x10] sm:$0xff]
    %v87 = vsub.f32 %v86, %v40
    %v88 = vmul.f32 %v87, 0.31830987
    %v89 = vadd.f32 %v88, 0.5
    %v90 = vfloor.f32 %v89
    %v91 = vmul.f32 %v90, 3.1415927
    %v92 = vsub.f32 %v87, %v91
    %v93 = vmul.f32 %v92, %v92
    %v94 = vsub.f32 %v86, %v48
    %v95 = vmul.f32 %v94, 0.31830987
    %v96 = vadd.f32 %v95, 0.5
    %v97 = vfloor.f32 %v96
    %v98 = vmul.f32 %v97, 3.1415927
    %v99 = vsub.f32 %v94, %v98
    %v100 = vmul.f32 %v99, %v99
    %v101 = vsub.f32 %v86, %v56
    %v102 = vmul.f32 %v101, 0.31830987
    %v103 = vadd.f32 %v102, 0.5
    %v104 = vfloor.f32 %v103
    %v105 = vmul.f32 %v104, 3.1415927
    %v106 = vsub.f32 %v101, %v105
    %v107 = vmul.f32 %v106, %v106
    %v108 = vadd.f32 %v47, %v78
    %v109 = vadd.f32 %v108, %v107
    %v110 = vadd.f32 %v47, %v100
    %v111 = vadd.f32 %v110, %v85
    %v112 = vmin.f32 %v109, %v111
    %v113 = vadd.f32 %v71, %v55
    %v114 = vadd.f32 %v113, %v107
    %v115 = vmin.f32 %v112, %v114
    %v116 = vadd.f32 %v71, %v100
    %v117 = vadd.f32 %v116, %v63
    %v118 = vmin.f32 %v115, %v117
    %v119 = vadd.f32 %v93, %v55
    %v120 = vadd.f32 %v119, %v85
    %v121 = vmin.f32 %v118, %v120
    %v122 = vadd.f32 %v93, %v78
    %v123 = vadd.f32 %v122, %v63
    %v124 = vmin.f32 %v121, %v123
    %125 = vadd.xlane.f32.xlu0 %v124
    %v126 = vpop.xlane.xlu0 %125
    %vm127 = vcmask 7168
    %128 = vst.msk [vmem:[%s2] sm:$0xff] %vm127, %v126
    // Predicated region
    $region18: #{tpu_custom_call.1} parent=1 // pred_check
      _
    $region19: #{tpu_custom_call.1} parent=1 // pred_check_branch
      %130 = sbr.rel (0) target = $region21
    $region20: #{tpu_custom_call.1} parent=1 // pred_region
      _
    $region21: #{tpu_custom_call.1} parent=1 // pred_fallthru
      _
    // Predicated region
    $region22: #{tpu_custom_call.1} parent=1 // pred_check
      _
    $region23: #{tpu_custom_call.1} parent=1 // pred_check_branch
      %132 = sbr.rel (0) target = $region25
    $region24: #{tpu_custom_call.1} parent=1 // pred_region
      _
    $region25: #{tpu_custom_call.1} parent=1 // pred_fallthru
      _
    %133 = vsyncpa [#allocation3], 1
    %134 = vsyncpa [#allocation5], 1

</llo_original>
